<compile_context>
chip_gen: v5e
topology: v5e:2x2
jax: 0.10.0
libtpu: 0.0.40
codegen_flags: <defaults>
</compile_context>

<pallas_src>
import functools

import jax
import jax.numpy as jnp
from jax.experimental import pallas as pl
from jax.experimental.pallas import tpu as pltpu


def _mse_onehot_kernel(est_ref, hot_ref, out_ref, *, k, strip, tb,
                       tiles_per_core, bp, need_mask, n_strips, unroll):
    p = pl.program_id(0)            # core / parallel axis
    i = pl.program_id(1)            # sequential tile axis (carried accumulator)

    @pl.when(i == 0)
    def _():
        out_ref[...] = jnp.zeros_like(out_ref)

    w = est_ref.shape[1]
    t = p * tiles_per_core + i      # global tile index (may be a phantom tile)
    row0 = t * tb                   # first packed row handled by this tile

    # Hoisted constants (never rebuilt inside the strip loop).
    lane = jax.lax.broadcasted_iota(jnp.int32, (strip, w), 1)
    sub = jax.lax.broadcasted_iota(jnp.int32, (strip, w), 0)

    def strip_body(j, part):
        r = pl.multiple_of(j * strip, strip)
        hr = pl.multiple_of(row0 + r, strip)
        est = est_ref[pl.ds(r, strip), :].astype(jnp.float32)    # widen in-vreg
        hot = hot_ref[pl.ds(hr, strip), :]                       # (strip, k)
        match = lane == hot[:, 0:1]
        for g in range(1, k):                                    # disjoint groups
            match = match | (lane == hot[:, g:g + 1])
        onehot = match.astype(jnp.float32)
        if need_mask:
            # Rows >= bp are ragged-tail / phantom padding: hot is -1 there
            # (onehot == 0); also zero the unspecified estimate values.
            est = jnp.where(sub < (bp - row0 - r), est, 0.0)
        d = est - onehot
        return part + d * d                                      # VPU-only

    part = jax.lax.fori_loop(0, n_strips, strip_body,
                             jnp.zeros((strip, w), jnp.float32), unroll=unroll)
    out_ref[...] += part            # one accumulator touch per grid tile


def _round_up(x, m):
    return (x + m - 1) // m * m


def mse_loss(estimate, target, *, target_block_bytes=8 * 1024 * 1024,
             max_block_rows=None):
    """MSE(estimate, one_hot(target)), mean over all B*N elements.

    estimate: (B, N) float (f32 or bf16); target: (B,) integer class ids.
    """
    B, N = estimate.shape
    itemsize = estimate.dtype.itemsize

    # --- lane-dense packing: (B, N) -> (B/k, k*N) with k | B and k*N <= 128 ---
    k_cap = max(1, 128 // N) if N < 128 else 1
    k = 1
    for cand in range(min(k_cap, B), 0, -1):
        if B % cand == 0:
            k = cand
            break
    bp, w = B // k, k * N
    est = estimate.reshape(bp, w)                        # contiguous -> free
    tgt = target.astype(jnp.int32).reshape(bp, k)
    hot = tgt + (jnp.arange(k, dtype=jnp.int32) * N)[None, :]   # lane of the 1

    # --- tiling / grid --------------------------------------------------------
    strip = 16 if itemsize == 2 else 8                   # input sublane packing
    rows = max(1, target_block_bytes // max(1, w * itemsize))
    if max_block_rows is not None:
        rows = min(rows, max_block_rows)
    tb = _round_up(min(rows, bp), strip)                 # packed rows per tile
    n_strips = tb // strip
    tiles = pl.cdiv(bp, tb)                              # real row-blocks of est
    num_cores = 2 if tiles >= 2 else 1                   # v7x megacore split
    tiles_per_core = pl.cdiv(tiles, num_cores)
    padded_rows = num_cores * tiles_per_core * tb
    need_mask = padded_rows != bp
    if need_mask:
        hot = jnp.pad(hot, ((0, padded_rows - bp), (0, 0)), constant_values=-1)

    kernel = functools.partial(
        _mse_onehot_kernel, k=k, strip=strip, tb=tb,
        tiles_per_core=tiles_per_core, bp=bp, need_mask=need_mask,
        n_strips=n_strips, unroll=min(8, n_strips))

    est_spec = pl.BlockSpec(
        (tb, w),
        # Phantom tiles (megacore remainder) are clamped onto the last real
        # block; their rows are masked out in-kernel.
        lambda p, i: (jnp.minimum(p * tiles_per_core + i, tiles - 1), 0))
    hot_spec = pl.BlockSpec((padded_rows, k), lambda p, i: (0, 0))  # resident

    partials = pl.pallas_call(
        kernel,
        out_shape=jax.ShapeDtypeStruct((num_cores * strip, w), jnp.float32),
        grid_spec=pltpu.PrefetchScalarGridSpec(
            num_scalar_prefetch=0,
            grid=(num_cores, tiles_per_core),
            in_specs=[est_spec, hot_spec],
            out_specs=pl.BlockSpec((strip, w), lambda p, i: (p, 0)),
        ),
        compiler_params=pltpu.CompilerParams(
            dimension_semantics=("parallel", "arbitrary"),
            vmem_limit_bytes=32 * 1024 * 1024,
        ),
        cost_estimate=pl.CostEstimate(
            flops=3 * B * N,
            transcendentals=0,
            bytes_accessed=B * N * itemsize + padded_rows * k * 4
            + num_cores * strip * w * 4),
    )(est, hot)

    # Tiny cross-core / cross-lane reduction + mean scale, outside the kernel.
    return jnp.sum(partials) * (1.0 / (B * N))


def mse_loss_ref(estimate, target):
    n = estimate.shape[1]
    onehot = jax.nn.one_hot(target, n, dtype=jnp.float32)
    return jnp.mean((estimate.astype(jnp.float32) - onehot) ** 2)


if __name__ == "__main__":
    key = jax.random.PRNGKey(0)
    ks = jax.random.split(key, 8)

    def check(est, tgt, **kw):
        out = jax.block_until_ready(mse_loss(est, tgt, **kw))
        ref = mse_loss_ref(est, tgt)
        assert jnp.allclose(out, ref, rtol=1e-4, atol=1e-5), (out, ref)
        return out

    # 1) Module-typical small case (B=8, N=32): packed to (2, 128), one tile,
    #    ragged rows masked in-kernel (no estimate padding).
    est1 = jax.random.normal(ks[0], (8, 32), dtype=jnp.float32)
    tgt1 = jax.random.randint(ks[1], (8,), 0, 32, dtype=jnp.int32)
    check(est1, tgt1)

    # 2) N=10 classes (CIFAR/MNIST style): multi-tile, 2-core grid, exact fit.
    est2 = jax.random.normal(ks[2], (256, 10), dtype=jnp.float32)
    tgt2 = jax.random.randint(ks[3], (256,), 0, 10, dtype=jnp.int32)
    check(est2, tgt2, max_block_rows=8)

    # 3) Ragged batch: odd tile count -> clamped + fully-masked phantom tile.
    est3 = jax.random.normal(ks[4], (328, 10), dtype=jnp.float32)
    tgt3 = jax.random.randint(ks[5], (328,), 0, 10, dtype=jnp.int32)
    check(est3, tgt3, max_block_rows=16)

    # 4) bf16 estimates stream as bf16 and are widened in-vreg.
    est4 = jax.random.normal(ks[6], (256, 32), dtype=jnp.float32).astype(jnp.bfloat16)
    tgt4 = jax.random.randint(ks[7], (256,), 0, 32, dtype=jnp.int32)
    check(est4, tgt4, max_block_rows=16)

    print("KERNEL_OK")
</pallas_src>

<mosaic_0001>
module attributes {stable_mosaic.version = 11 : i64} {
  func.func @_mse_onehot_kernel(%arg0: i32, %arg1: i32, %arg2: memref<8x128xf32, #tpu.memory_space<vmem>>, %arg3: memref<8x4xi32, #tpu.memory_space<vmem>>, %arg4: memref<8x128xf32, #tpu.memory_space<vmem>>) attributes {dimension_semantics = [#tpu.dimension_semantics<parallel>, #tpu.dimension_semantics<arbitrary>], iteration_bounds = array<i64: 1, 1>, scalar_prefetch = 0 : i64, scratch_operands = 0 : i64, tpu.core_type = #tpu.core_type<tc>, window_params = [{transform_indices = @transform_0, window_bounds = array<i64: 8, 128>}, {pipeline_mode = #tpu.pipeline_mode<synchronous>, transform_indices = @transform_1, window_bounds = array<i64: 8, 4>}, {transform_indices = @transform_2, window_bounds = array<i64: 8, 128>}]} {
    %c0_i32 = arith.constant 0 : i32
    %0 = arith.cmpi eq, %arg1, %c0_i32 : i32
    %1 = arith.extui %0 : i1 to i32
    %c0_i32_0 = arith.constant 0 : i32
    %2 = arith.cmpi ne, %1, %c0_i32_0 : i32
    scf.if %2 {
      %cst_10 = arith.constant 0.000000e+00 : f32
      %46 = vector.broadcast %cst_10 : f32 to vector<8x128xf32>
      %c0_11 = arith.constant 0 : index
      %c0_12 = arith.constant 0 : index
      %47 = vector.load %arg4[%c0_11, %c0_12] : memref<8x128xf32, #tpu.memory_space<vmem>>, vector<8x128xf32>
      tpu.vector_store %arg4[%c0_11, %c0_12], %46 {strides = array<i32>} : memref<8x128xf32, #tpu.memory_space<vmem>>, vector<8x128xf32>,
    } else {
    }
    %c1_i32 = arith.constant 1 : i32
    %3 = arith.muli %arg0, %c1_i32 : i32
    %4 = arith.addi %3, %arg1 : i32
    %c8_i32 = arith.constant 8 : i32
    %5 = arith.muli %4, %c8_i32 : i32
    %6 = tpu.iota {dimensions = array<i32: 1>} : vector<8x128xi32>
    %7 = tpu.iota {dimensions = array<i32: 0>} : vector<8x128xi32>
    %cst = arith.constant 0.000000e+00 : f32
    %8 = vector.broadcast %cst : f32 to vector<8x128xf32>
    %c0_i32_1 = arith.constant 0 : i32
    %c8_i32_2 = arith.constant 8 : i32
    %9 = arith.muli %c0_i32_1, %c8_i32_2 : i32
    %10 = tpu.assume_multiple %9, 8 : i32
    %11 = arith.addi %5, %10 : i32
    %12 = tpu.assume_multiple %11, 8 : i32
    %13 = arith.index_cast %10 : i32 to index
    %c0 = arith.constant 0 : index
    %14 = vector.load %arg2[%13, %c0] : memref<8x128xf32, #tpu.memory_space<vmem>>, vector<8x128xf32>
    %15 = arith.index_cast %12 : i32 to index
    %c0_3 = arith.constant 0 : index
    %16 = vector.load %arg3[%15, %c0_3] : memref<8x4xi32, #tpu.memory_space<vmem>>, vector<8x4xi32>
    %17 = vector.extract_strided_slice %16 {offsets = [0, 0], sizes = [8, 1], strides = [1, 1]} : vector<8x4xi32> to vector<8x1xi32>
    %18 = vector.broadcast %17 : vector<8x1xi32> to vector<8x128xi32>
    %19 = arith.cmpi eq, %6, %18 : vector<8x128xi32>
    %20 = vector.extract_strided_slice %16 {offsets = [0, 1], sizes = [8, 1], strides = [1, 1]} : vector<8x4xi32> to vector<8x1xi32>
    %21 = vector.broadcast %20 : vector<8x1xi32> to vector<8x128xi32>
    %22 = arith.cmpi eq, %6, %21 : vector<8x128xi32>
    %23 = arith.ori %19, %22 : vector<8x128xi1>
    %24 = vector.extract_strided_slice %16 {offsets = [0, 2], sizes = [8, 1], strides = [1, 1]} : vector<8x4xi32> to vector<8x1xi32>
    %25 = vector.broadcast %24 : vector<8x1xi32> to vector<8x128xi32>
    %26 = arith.cmpi eq, %6, %25 : vector<8x128xi32>
    %27 = arith.ori %23, %26 : vector<8x128xi1>
    %28 = vector.extract_strided_slice %16 {offsets = [0, 3], sizes = [8, 1], strides = [1, 1]} : vector<8x4xi32> to vector<8x1xi32>
    %29 = vector.broadcast %28 : vector<8x1xi32> to vector<8x128xi32>
    %30 = arith.cmpi eq, %6, %29 : vector<8x128xi32>
    %31 = arith.ori %27, %30 : vector<8x128xi1>
    %32 = arith.extui %31 : vector<8x128xi1> to vector<8x128xi32>
    %33 = arith.sitofp %32 : vector<8x128xi32> to vector<8x128xf32>
    %c2_i32 = arith.constant 2 : i32
    %34 = arith.subi %c2_i32, %5 : i32
    %35 = arith.subi %34, %10 : i32
    %36 = vector.broadcast %35 : i32 to vector<8x128xi32>
    %37 = arith.cmpi slt, %7, %36 : vector<8x128xi32>
    %cst_4 = arith.constant 0.000000e+00 : f32
    %38 = vector.broadcast %cst_4 : f32 to vector<8x128xf32>
    %39 = arith.select %37, %14, %38 : vector<8x128xi1>, vector<8x128xf32>
    %40 = arith.subf %39, %33 : vector<8x128xf32>
    %41 = arith.mulf %40, %40 : vector<8x128xf32>
    %42 = arith.addf %8, %41 : vector<8x128xf32>
    %c1_i32_5 = arith.constant 1 : i32
    %c0_6 = arith.constant 0 : index
    %c0_7 = arith.constant 0 : index
    %43 = vector.load %arg4[%c0_6, %c0_7] : memref<8x128xf32, #tpu.memory_space<vmem>>, vector<8x128xf32>
    %44 = arith.addf %43, %42 : vector<8x128xf32>
    %c0_8 = arith.constant 0 : index
    %c0_9 = arith.constant 0 : index
    %45 = vector.load %arg4[%c0_8, %c0_9] : memref<8x128xf32, #tpu.memory_space<vmem>>, vector<8x128xf32>
    tpu.vector_store %arg4[%c0_8, %c0_9], %44 {strides = array<i32>} : memref<8x128xf32, #tpu.memory_space<vmem>>, vector<8x128xf32>,
    return
  }
  func.func @transform_0(%arg0: i32, %arg1: i32) -> (i32, i32) {
    %c1_i32 = arith.constant 1 : i32
    %0 = arith.muli %arg0, %c1_i32 : i32
    %1 = arith.addi %0, %arg1 : i32
    %c0_i32 = arith.constant 0 : i32
    %2 = arith.minsi %1, %c0_i32 : i32
    %c0_i32_0 = arith.constant 0 : i32
    %c0_i32_1 = arith.constant 0 : i32
    return %2, %c0_i32_0 : i32, i32
  }
  func.func @transform_1(%arg0: i32, %arg1: i32) -> (i32, i32) {
    %c0_i32 = arith.constant 0 : i32
    %c0_i32_0 = arith.constant 0 : i32
    %c0_i32_1 = arith.constant 0 : i32
    return %c0_i32, %c0_i32_0 : i32, i32
  }
  func.func @transform_2(%arg0: i32, %arg1: i32) -> (i32, i32) {
    %c0_i32 = arith.constant 0 : i32
    %c0_i32_0 = arith.constant 0 : i32
    return %arg0, %c0_i32 : i32, i32
  }
}

</mosaic_0001>

<llo_original>
// kernel: tpu_custom_call.1
$region0: #{tpu_custom_call.1}
  #allocation0 [shape = 'u32[]', space=smem, size = 0x4, offset = 0x4, fixed_abs, tag = 'smem constant byte address 0x4 - core index']
  #allocation1 [shape = 'u32[72,128]{1,0:T(1,128)}', space=vmem, size = 0x9000, scoped, tag = 'internal scratch']
  %s0 = inlined_call_operand.vmem [shape: f32[2,128], index: 0, kind: input, shape index: {}]
  %s1 = inlined_call_operand.vmem [shape: s32[8,4], index: 1, kind: input, shape index: {}]
  %s2 = inlined_call_operand.hbm [shape: f32[8,128], index: 2, kind: output, shape index: {}]
  %s3 = sld [smem:[#allocation0]]
  $region22: #{tpu_custom_call.1} parent=0
    _
  %s5 = ssub.s32 1, %s3
  %s6 = scalar_select 0, %s5, %s3
  $region1: #{tpu_custom_call.1} parent=0
    #allocation2 [shape = 'u8[4096]{0}', space=vmem, size = 0x1000, scoped, tag = 'output window, operand 0, single buffered']
    #allocation3 [shape = 's32[1]{0}', space=sflag, size = 0x4, scoped, tag = 'scoped memory for tpu_custom_call.1']
    %7 = vsyncpa [#allocation3], 0
    // Predicated region
    $region2: #{tpu_custom_call.1} parent=1 // pred_check
      _
    $region3: #{tpu_custom_call.1} parent=1 // pred_check_branch
      %9 = sbr.rel (0) target = $region5
    $region4: #{tpu_custom_call.1} parent=1 // pred_region
      %s10 = sadd.s32 0, 0
      %p11 = scmp.lt.s32.totalorder %s10, 0
      %s12 = scalar_select %p11, %s10, 0
      %s13 = smul.u32 4, %s12
      %s14 = ssub.s32 1, %s13
      %s15 = smul.u32 2, %s14
      %p16 = scmp.lt.s32.totalorder %s13, 0
      %s17 = scalar_select %p16, %s13, 0
      %s18 = smul.addr %s17, 2
      %s19 = scalar_lea.vmem %s0, %s18
      %s20 = sadd.s32 0, 0
      %p21 = scmp.lt.s32.totalorder %s20, 0
      %s22 = scalar_select %p21, %s20, 0
      %s23 = smul.u32 4, %s22
      %s24 = ssub.s32 1, %s23
      %s25 = smul.u32 2, %s24
    $region5: #{tpu_custom_call.1} parent=1 // pred_fallthru
      _
    // Predicated region
    $region6: #{tpu_custom_call.1} parent=1 // pred_check
      _
    $region7: #{tpu_custom_call.1} parent=1 // pred_check_branch
      %27 = sbr.rel (0) target = $region9
    $region8: #{tpu_custom_call.1} parent=1 // pred_region
      _
    $region9: #{tpu_custom_call.1} parent=1 // pred_fallthru
      _
    %s28 = sadd.s32 0, 0
    %p29 = scmp.lt.s32.totalorder %s28, 0
    %s30 = scalar_select %p29, %s28, 0
    %s31 = smul.u32 4, %s30
    %s32 = ssub.s32 1, %s31
    %s33 = smul.u32 2, %s32
    %p34 = scmp.lt.s32.totalorder %s31, 0
    %s35 = scalar_select %p34, %s31, 0
    %s36 = smul.addr %s35, 2
    %s37 = scalar_lea.vmem %s0, %s36
    %s38 = sadd.s32 0, 0
    %p39 = scmp.lt.s32.totalorder %s38, 0
    %s40 = scalar_select %p39, %s38, 0
    %s41 = smul.u32 4, %s40
    %s42 = ssub.s32 1, %s41
    %s43 = smul.u32 2, %s42
    %p44 = scmp.lt.s32.totalorder %s41, 0
    %s45 = scalar_select %p44, %s41, 0
    %s46 = smul.addr %s45, 2
    %s47 = scalar_lea.vmem %s0, %s46
    %s48 = sadd.s32 0, 0
    %p49 = scmp.lt.s32.totalorder %s48, 0
    %s50 = scalar_select %p49, %s48, 0
    %s51 = smul.u32 4, %s50
    %s52 = ssub.s32 1, %s51
    %s53 = smul.u32 2, %s52
    %p54 = scmp.eq.s32.totalorder 0, 0
    // Predicated region
    $region10: #{tpu_custom_call.1} parent=1 // pred_check
      %p55 = pneg %p54
    $region11: #{tpu_custom_call.1} parent=1 // pred_check_branch
      %57 = sbr.rel (%p55) target = $region13
    $region12: #{tpu_custom_call.1} parent=1 // pred_region
      %58 = vst [vmem:[#allocation2] sm:$0xff] 0.0
    $region13: #{tpu_custom_call.1} parent=1 // pred_fallthru
      _
    %s59 = sadd.s32 0, 0
    %s60 = smul.u32 %s59, 8
    %v61 = vlaneseq
    %v62 = vand.u32 %v61, 127
    %v63 = vlaneseq
    %v64 = vshrl.u32 %v63, 7
    %s65 = sadd.s32 %s60, 0
    %v66 = vld [vmem:[%s47] sm:$0xff]
    %s67 = scalar_lea.vmem %s1, %s65
    %v68 = vld [vmem:[%s67] sm:$0xff]
    %69 = vset.pattern.permute.xlu0 0
    %70 = vperm.xlu0 %69, %v68
    %v71 = vpop.permute.xlu0 %70
    %vm72 = vcmp.eq.s32.totalorder %v62, %v71
    %73 = vset.pattern.permute.xlu0 1
    %74 = vperm.xlu0 %73, %v68
    %v75 = vpop.permute.xlu0 %74
    %vm76 = vcmp.eq.s32.totalorder %v62, %v75
    %vm77 = vmor %vm72, %vm76
    %78 = vset.pattern.permute.xlu0 2
    %79 = vperm.xlu0 %78, %v68
    %v80 = vpop.permute.xlu0 %79
    %vm81 = vcmp.eq.s32.totalorder %v62, %v80
    %vm82 = vmor %vm77, %vm81
    %83 = vset.pattern.permute.xlu0 3
    %84 = vperm.xlu0 %83, %v68
    %v85 = vpop.permute.xlu0 %84
    %vm86 = vcmp.eq.s32.totalorder %v62, %v85
    %vm87 = vmor %vm82, %vm86
    %v88 = vsel %vm87, 1, 0
    %v89 = vcvt.s32.f32 %v88
    %s90 = ssub.s32 2, %s60
    %s91 = ssub.s32 %s90, 0
    %v92 = vstv %s91
    %vm93 = vcmp.lt.s32.totalorder %v64, %v92
    %v94 = vsel %vm93, %v66, 0.0
    %v95 = vsub.f32 %v94, %v89
    %v96 = vmul.f32 %v95, %v95
    %v97 = vadd.f32 %v96, 0.0
    %v98 = vld [vmem:[#allocation2] sm:$0xff]
    %v99 = vadd.f32 %v98, %v97
    %100 = vst [vmem:[#allocation2] sm:$0xff] %v99
    // Predicated region
    $region14: #{tpu_custom_call.1} parent=1 // pred_check
      _
    $region15: #{tpu_custom_call.1} parent=1 // pred_check_branch
      %102 = sbr.rel (0) target = $region17
    $region16: #{tpu_custom_call.1} parent=1 // pred_region
      %104 = vsyncadd [#allocation3], 0
      %s106 = sshll.u32 [#allocation2], 4
      %s107 = int_to_ptr.vmem [resolvable:$true] %s106
      %s108 = sshll.u32 %s2, 4
      %s109 = int_to_ptr.hbm [resolvable:$true] %s108
      %111 = dma.vmem_to_hbm [thread:$0]  %s107, 128, %s109, [#allocation3]
    $region17: #{tpu_custom_call.1} parent=1 // pred_fallthru
      _
    // Predicated region
    $region18: #{tpu_custom_call.1} parent=1 // pred_check
      _
    $region19: #{tpu_custom_call.1} parent=1 // pred_check_branch
      %113 = sbr.rel (0) target = $region21
    $region20: #{tpu_custom_call.1} parent=1 // pred_region
      %115 = dma.done [#allocation3], 128
    $region21: #{tpu_custom_call.1} parent=1 // pred_fallthru
      _
    %116 = vsyncpa [#allocation3], 1

</llo_original>
